<compile_context>
chip_gen: v6e
topology: v6e:2x2x1
jax: 0.10.0
libtpu: 0.0.40
codegen_flags: <defaults>
</compile_context>

<pallas_src>
import jax
import jax.numpy as jnp
from jax.experimental import pallas as pl
from jax.experimental.pallas import tpu as pltpu

_SUB = 8  # f32 sublane multiple (second-to-last dim alignment)


def _round_up(a: int, b: int) -> int:
    return (a + b - 1) // b * b


def linear_sigmoid_kernel(x_ref, w_ref, b_ref, o_ref):
    # x_ref: (TM, K_pad), w_ref: (K_pad, OUT_pad), b_ref: (1, OUT_pad),
    # o_ref: (TM, OUT_pad).  Single MXU pass + EUP tanh.
    z = jnp.dot(x_ref[...], w_ref[...], preferred_element_type=jnp.float32)
    z = z + b_ref[...]                      # broadcast bias over rows
    # Exact sigmoid via one EUP push: sigmoid(z) = 0.5*(tanh(z/2) + 1).
    o_ref[...] = 0.5 * (jnp.tanh(0.5 * z) + 1.0)


def make_linear_sigmoid(weight, bias):
    """Returns a jitted fn x -> sigmoid(x @ weight.T + bias).

    weight: (out, in), bias: (out,).  The padded weights are built once here
    and become compile-time constants of the jitted executable.
    """
    out_f, k = weight.shape
    k_pad = _round_up(k, _SUB)        # 16: sublane-aligned, full-dim block
    out_pad = _round_up(out_f, _SUB)  # 8: narrow writeback, full-dim block

    # Padded once (model constants).  Extra rows/cols are zeros, so padded
    # output columns are sigmoid(0) and padded rows are garbage -- both are
    # sliced away below.
    w_pad = jnp.pad(weight.T.astype(jnp.float32),
                    ((0, k_pad - k), (0, out_pad - out_f)))
    b_pad = jnp.pad(bias.astype(jnp.float32)[None, :],
                    ((0, 0), (0, out_pad - out_f)))

    @jax.jit
    def apply(x):
        n = x.shape[0]
        assert x.shape[1] == k
        n_pad = _round_up(max(n, _SUB), _SUB)
        # Row tile: <= 512, aim for >= 2 grid steps (v7x has 2 TensorCores),
        # and keep row-padding waste <= one tile.
        tm = max(_SUB, min(512, _round_up(-(-n_pad // 2), _SUB)))
        n_pad_full = _round_up(n_pad, tm)

        x_pad = jnp.pad(x.astype(jnp.float32),
                        ((0, n_pad_full - n), (0, k_pad - k)))

        y_pad = pl.pallas_call(
            linear_sigmoid_kernel,
            out_shape=jax.ShapeDtypeStruct((n_pad_full, out_pad), jnp.float32),
            grid_spec=pltpu.PrefetchScalarGridSpec(
                num_scalar_prefetch=0,
                grid=(n_pad_full // tm,),
                in_specs=[
                    pl.BlockSpec((tm, k_pad), lambda i: (i, 0)),        # x rows
                    # W^T / bias are grid-invariant (constant index_map) so
                    # Pallas DMAs them once; pl.Buffered(1) intentionally not
                    # used (benefit ~KiB, avoids version sensitivity).
                    pl.BlockSpec((k_pad, out_pad), lambda i: (0, 0)),   # W^T
                    pl.BlockSpec((1, out_pad), lambda i: (0, 0)),       # bias
                ],
                out_specs=pl.BlockSpec((tm, out_pad), lambda i: (i, 0)),
            ),
            compiler_params=pltpu.CompilerParams(
                dimension_semantics=("parallel",)),
        )(x_pad, w_pad, b_pad)

        return y_pad[:n, :out_f]

    return apply


if __name__ == "__main__":
    key = jax.random.PRNGKey(0)
    k_x, k_w, k_b = jax.random.split(key, 3)

    in_features, out_features, batch = 10, 2, 3

    # Deterministic "PyTorch-style" init: U(-1/sqrt(in), 1/sqrt(in))
    bound = 1.0 / jnp.sqrt(jnp.float32(in_features))
    weight = jax.random.uniform(
        k_w, (out_features, in_features), jnp.float32, -bound, bound)
    bias = jax.random.uniform(
        k_b, (out_features,), jnp.float32, -bound, bound)

    x = jax.random.normal(k_x, (batch, in_features), jnp.float32)

    model = make_linear_sigmoid(weight, bias)
    y = model(x)
    jax.block_until_ready(y)

    # Reference check in plain JAX (same math as nn.Linear + Sigmoid).
    y_ref = jax.nn.sigmoid(x @ weight.T + bias)
    assert y.shape == (batch, out_features)
    assert jnp.allclose(y, y_ref, atol=1e-5, rtol=1e-5), "mismatch vs reference"

    print("KERNEL_OK")
</pallas_src>

<mosaic_0001>
module attributes {stable_mosaic.version = 11 : i64} {
  func.func @linear_sigmoid_kernel(%arg0: i32, %arg1: memref<8x16xf32, #tpu.memory_space<vmem>>, %arg2: memref<16x8xf32, #tpu.memory_space<vmem>>, %arg3: memref<1x8xf32, #tpu.memory_space<vmem>>, %arg4: memref<8x8xf32, #tpu.memory_space<vmem>>) attributes {dimension_semantics = [#tpu.dimension_semantics<parallel>], iteration_bounds = array<i64: 1>, scalar_prefetch = 0 : i64, scratch_operands = 0 : i64, tpu.core_type = #tpu.core_type<tc>, window_params = [{transform_indices = @transform_0, window_bounds = array<i64: 8, 16>}, {pipeline_mode = #tpu.pipeline_mode<synchronous>, transform_indices = @transform_1, window_bounds = array<i64: 16, 8>}, {pipeline_mode = #tpu.pipeline_mode<synchronous>, transform_indices = @transform_2, window_bounds = array<i64: 1, 8>}, {transform_indices = @transform_3, window_bounds = array<i64: 8, 8>}]} {
    %c0 = arith.constant 0 : index
    %c0_0 = arith.constant 0 : index
    %0 = vector.load %arg1[%c0, %c0_0] : memref<8x16xf32, #tpu.memory_space<vmem>>, vector<8x16xf32>
    %c0_1 = arith.constant 0 : index
    %c0_2 = arith.constant 0 : index
    %1 = vector.load %arg2[%c0_1, %c0_2] : memref<16x8xf32, #tpu.memory_space<vmem>>, vector<16x8xf32>
    %cst = arith.constant dense<0.000000e+00> : vector<8x8xf32>
    %2 = tpu.matmul %0, %1, %cst {dimension_numbers = #tpu.dot_dimension_numbers<[1], [0], [0], [1], [0, 0, 1, 1], [], []>} : vector<8x16xf32>, vector<16x8xf32>, vector<8x8xf32> -> vector<8x8xf32>
    %c0_3 = arith.constant 0 : index
    %c0_4 = arith.constant 0 : index
    %3 = vector.load %arg3[%c0_3, %c0_4] : memref<1x8xf32, #tpu.memory_space<vmem>>, vector<1x8xf32>
    %4 = vector.broadcast %3 : vector<1x8xf32> to vector<8x8xf32>
    %5 = arith.addf %2, %4 : vector<8x8xf32>
    %cst_5 = arith.constant 5.000000e-01 : f32
    %6 = vector.broadcast %cst_5 : f32 to vector<8x8xf32>
    %7 = arith.mulf %6, %5 : vector<8x8xf32>
    %8 = math.tanh %7 : vector<8x8xf32>
    %cst_6 = arith.constant 1.000000e+00 : f32
    %9 = vector.broadcast %cst_6 : f32 to vector<8x8xf32>
    %10 = arith.addf %8, %9 : vector<8x8xf32>
    %cst_7 = arith.constant 5.000000e-01 : f32
    %11 = vector.broadcast %cst_7 : f32 to vector<8x8xf32>
    %12 = arith.mulf %11, %10 : vector<8x8xf32>
    %c0_8 = arith.constant 0 : index
    %c0_9 = arith.constant 0 : index
    %13 = vector.load %arg4[%c0_8, %c0_9] : memref<8x8xf32, #tpu.memory_space<vmem>>, vector<8x8xf32>
    tpu.vector_store %arg4[%c0_8, %c0_9], %12 {strides = array<i32>} : memref<8x8xf32, #tpu.memory_space<vmem>>, vector<8x8xf32>,
    return
  }
  func.func @transform_0(%arg0: i32) -> (i32, i32) {
    %c0_i32 = arith.constant 0 : i32
    %c0_i32_0 = arith.constant 0 : i32
    return %arg0, %c0_i32 : i32, i32
  }
  func.func @transform_1(%arg0: i32) -> (i32, i32) {
    %c0_i32 = arith.constant 0 : i32
    %c0_i32_0 = arith.constant 0 : i32
    %c0_i32_1 = arith.constant 0 : i32
    return %c0_i32, %c0_i32_0 : i32, i32
  }
  func.func @transform_2(%arg0: i32) -> (i32, i32) {
    %c0_i32 = arith.constant 0 : i32
    %c0_i32_0 = arith.constant 0 : i32
    %c0_i32_1 = arith.constant 0 : i32
    return %c0_i32, %c0_i32_0 : i32, i32
  }
  func.func @transform_3(%arg0: i32) -> (i32, i32) {
    %c0_i32 = arith.constant 0 : i32
    %c0_i32_0 = arith.constant 0 : i32
    return %arg0, %c0_i32 : i32, i32
  }
}

</mosaic_0001>

<llo_original>
// kernel: apply.1
$region0: #{apply.1}
  #allocation0 [shape = 'u32[]', space=smem, size = 0x4, offset = 0x4, fixed_abs, tag = 'smem constant byte address 0x4 - core index']
  #allocation1 [shape = 'u32[144,128]{1,0:T(1,128)}', space=vmem, size = 0x12000, scoped, tag = 'internal scratch']
  %s0 = inlined_call_operand.vmem [shape: f32[8,16], index: 0, kind: input, shape index: {}]
  %s1 = inlined_call_operand.hbm [shape: f32[16,8], index: 1, kind: input, shape index: {}]
  %s2 = inlined_call_operand.vmem [shape: f32[1,8], index: 2, kind: input, shape index: {}]
  %s3 = inlined_call_operand.vmem [shape: f32[8,8], index: 3, kind: output, shape index: {}]
  %s4 = sld [smem:[#allocation0]]
  $region26: #{apply.1} parent=0
    _
  %s6 = ssub.s32 1, %s4
  %s7 = scalar_select 0, %s6, %s4
  $region1: #{apply.1} parent=0
    #allocation2 [shape = 'u8[8192]{0}', space=vmem, size = 0x2000, scoped, tag = 'input window, operand 1, single buffered']
    #allocation3 [shape = 's32[1]{0}', space=sflag, size = 0x4, scoped, tag = 'scoped memory for apply.1']
    %8 = vsyncpa [#allocation3], 0
    // Predicated region
    $region2: #{apply.1} parent=1 // pred_check
      _
    $region3: #{apply.1} parent=1 // pred_check_branch
      %10 = sbr.rel (0) target = $region5
    $region4: #{apply.1} parent=1 // pred_region
      _
    $region5: #{apply.1} parent=1 // pred_fallthru
      _
    // Predicated region
    $region6: #{apply.1} parent=1 // pred_check
      _
    $region7: #{apply.1} parent=1 // pred_check_branch
      %12 = sbr.rel (0) target = $region9
    $region8: #{apply.1} parent=1 // pred_region
      %s14 = ssub.s32 256, 256
      %15 = vsyncadd [#allocation3], %s14
      %s16 = sshll.u32 [#allocation2], 4
      %s17 = int_to_ptr.vmem [resolvable:$true] %s16
      %22 = dma.hbm_to_vmem [thread:$0]  %s1, 256, %s17, [#allocation3], 128, 128, 8
    $region9: #{apply.1} parent=1 // pred_fallthru
      _
    // Predicated region
    $region10: #{apply.1} parent=1 // pred_check
      _
    $region11: #{apply.1} parent=1 // pred_check_branch
      %24 = sbr.rel (0) target = $region13
    $region12: #{apply.1} parent=1 // pred_region
      _
    $region13: #{apply.1} parent=1 // pred_fallthru
      _
    // Predicated region
    $region14: #{apply.1} parent=1 // pred_check
      _
    $region15: #{apply.1} parent=1 // pred_check_branch
      %26 = sbr.rel (0) target = $region17
    $region16: #{apply.1} parent=1 // pred_region
      %27 = dma.done [#allocation3], 256
    $region17: #{apply.1} parent=1 // pred_fallthru
      _
    %v28 = vld [vmem:[%s0] sm:$0xff]
    %v29 = vld [vmem:[#allocation2] sm:$0xff]
    %v30 = vld [vmem:[#allocation2 + $0x8] sm:$0xff]
    %v31 = vld [vmem:[%s2] sm:$0x1]
    %v33 = vlaneseq
    %v34 = vshrl.u32 %v33, 7
    %v35 = vsub.s32 0, %v34
    %v36 = vrot.slane %v31, %v35
    %vm38 = vcmask 130048
    %v40 = vsel %vm38, %v28, 0
    %42 = vmatprep.subr.mxu0 0.0
    %43 = vmatpush1.msra.mxu0 0.0
    %44 = vmatprep.subr.mxu0 0.0
    %45 = vmatpush1.msra.mxu0 0.0
    %46 = vmatprep.subr.mxu0 0.0
    %47 = vmatpush1.msra.mxu0 0.0
    %48 = vmatprep.subr.mxu0 0.0
    %49 = vmatpush1.msra.mxu0 0.0
    %50 = vmatprep.subr.mxu0 0.0
    %51 = vmatpush1.msra.mxu0 0.0
    %52 = vmatprep.subr.mxu0 0.0
    %53 = vmatpush1.msra.mxu0 0.0
    %54 = vmatprep.subr.mxu0 0.0
    %55 = vmatpush1.msra.mxu0 0.0
    %56 = vmatprep.subr.mxu0 0.0
    %57 = vmatpush1.msra.mxu0 0.0
    %58 = vmatprep.subr.mxu0 0.0
    %59 = vmatpush1.msra.mxu0 0.0
    %60 = vmatprep.subr.mxu0 0.0
    %61 = vmatpush1.msra.mxu0 0.0
    %62 = vmatprep.subr.mxu0 0.0
    %63 = vmatpush1.msra.mxu0 0.0
    %64 = vmatprep.subr.mxu0 0.0
    %65 = vmatpush1.msra.mxu0 0.0
    %66 = vmatprep.subr.mxu0 0.0
    %67 = vmatpush1.msra.mxu0 0.0
    %68 = vmatprep.subr.mxu0 0.0
    %69 = vmatpush1.msra.mxu0 0.0
    %70 = vmatprep.subr.mxu0 0.0
    %71 = vmatpush1.msra.mxu0 %v30
    %72 = vmatprep.subr.mxu0 0.0
    %73 = vmatpush1.msra.mxu0 %v29
    %74 = vmatprep.subr.mxu0 0.0
    %75 = vmatpush2.msra.mxu0 0.0
    %76 = vmatprep.subr.mxu0 0.0
    %77 = vmatpush2.msra.mxu0 0.0
    %78 = vmatprep.subr.mxu0 0.0
    %79 = vmatpush2.msra.mxu0 0.0
    %80 = vmatprep.subr.mxu0 0.0
    %81 = vmatpush2.msra.mxu0 0.0
    %82 = vmatprep.subr.mxu0 0.0
    %83 = vmatpush2.msra.mxu0 0.0
    %84 = vmatprep.subr.mxu0 0.0
    %85 = vmatpush2.msra.mxu0 0.0
    %86 = vmatprep.subr.mxu0 0.0
    %87 = vmatpush2.msra.mxu0 0.0
    %88 = vmatprep.subr.mxu0 0.0
    %89 = vmatpush2.msra.mxu0 0.0
    %90 = vmatprep.subr.mxu0 0.0
    %91 = vmatpush2.msra.mxu0 0.0
    %92 = vmatprep.subr.mxu0 0.0
    %93 = vmatpush2.msra.mxu0 0.0
    %94 = vmatprep.subr.mxu0 0.0
    %95 = vmatpush2.msra.mxu0 0.0
    %96 = vmatprep.subr.mxu0 0.0
    %97 = vmatpush2.msra.mxu0 0.0
    %98 = vmatprep.subr.mxu0 0.0
    %99 = vmatpush2.msra.mxu0 0.0
    %100 = vmatprep.subr.mxu0 0.0
    %101 = vmatpush2.msra.mxu0 0.0
    %102 = vmatprep.subr.mxu0 0.0
    %103 = vmatpush2.msra.mxu0 0.0
    %104 = vmatprep.subr.mxu0 0.0
    %105 = vmatpush2.msra.mxu0 0.0
    %106 = vmatprep.mubr.f32.mxu0 0.0
    %107 = vmatmul.mubr.f32.gmra.mxu0 %v40
    %v108 = vpop.f32.mrf.mxu0
    %v109 = vadd.f32 %v36, %v108
    %v110 = vpop.f32.mrf.mxu0
    %111 = vdwg.mxu0
    %v112 = vmul.f32 %v109, 0.5
    %v113 = vtanh.pop %v112
    %v114 = vadd.f32 %v113, 1.0
    %v115 = vmul.f32 %v114, 0.5
    %vm116 = vcmask 64512
    %117 = vst.msk [vmem:[%s3] sm:$0xff] %vm116, %v115
    // Predicated region
    $region18: #{apply.1} parent=1 // pred_check
      _
    $region19: #{apply.1} parent=1 // pred_check_branch
      %119 = sbr.rel (0) target = $region21
    $region20: #{apply.1} parent=1 // pred_region
      _
    $region21: #{apply.1} parent=1 // pred_fallthru
      _
    // Predicated region
    $region22: #{apply.1} parent=1 // pred_check
      _
    $region23: #{apply.1} parent=1 // pred_check_branch
      %121 = sbr.rel (0) target = $region25
    $region24: #{apply.1} parent=1 // pred_region
      _
    $region25: #{apply.1} parent=1 // pred_fallthru
      _
    %122 = vsyncpa [#allocation3], 1

</llo_original>
